<compile_context>
chip_gen: v7x
topology: tpu7x:2x2x1
jax: 0.10.0
libtpu: 0.0.40
codegen_flags: <defaults>
</compile_context>

<pallas_src>
import jax
import jax.numpy as jnp
from jax.experimental import pallas as pl
from jax.experimental.pallas import tpu as pltpu

N_PAD = 128  # lane-dense padded output width (>= n_out); avoids vst.msk partial stores


def _round_up(x, m):
    return ((x + m - 1) // m) * m


def baseline_kernel(ids_ref, emb_ref, w_ref, out_ref, acc_ref):
    s = pl.program_id(0)          # vocab split (parallel, for megacore on small B)
    v = pl.program_id(2)          # vocab tile within split (arbitrary / reduction)
    n_v = pl.num_programs(2)

    @pl.when(v == 0)
    def _init():
        acc_ref[...] = jnp.zeros_like(acc_ref)

    ids = ids_ref[...]                          # [tile_b, T] int32
    tile_b, seq_len = ids.shape
    tile_v = emb_ref.shape[0]
    v_start = (s * n_v + v) * tile_v            # global vocab offset of this tile

    # Token-count histogram over this vocab tile.  Live intermediate is only
    # [tile_b, tile_v] (never [B, T, V]).  Compares/adds stay in f32/int32
    # (v5e has no bf16 VALU); only the MXU operands are cast.
    lane_ids = jax.lax.broadcasted_iota(jnp.int32, (tile_b, tile_v), 1) + v_start
    if seq_len <= 32:
        # small T: static unroll
        counts = jnp.zeros((tile_b, tile_v), jnp.float32)
        for t in range(seq_len):
            counts = counts + (ids[:, t : t + 1] == lane_ids).astype(jnp.float32)
    else:
        # larger T: bounded unroll so live ranges stay small
        def body(t, c):
            tok = jax.lax.dynamic_slice_in_dim(ids, t, 1, axis=1)   # [tile_b, 1]
            return c + (tok == lane_ids).astype(jnp.float32)
        counts = jax.lax.fori_loop(
            0, seq_len, body, jnp.zeros((tile_b, tile_v), jnp.float32), unroll=8)

    # Embedding "gather" + sum over sequence == counts @ emb_tile   (MXU, f32 acc).
    acc_ref[...] += jnp.dot(
        counts.astype(emb_ref.dtype), emb_ref[...],
        preferred_element_type=jnp.float32)

    @pl.when(v == n_v - 1)
    def _finalize():
        pooled = acc_ref[...] * jnp.float32(1.0 / seq_len)          # mean over T
        # Final linear vs the lane-padded weight [E, 128]; bias is added in the
        # wrapper (so per-split partials can simply be summed).
        logits = jnp.dot(pooled, w_ref[...], preferred_element_type=jnp.float32)
        out_ref[0] = logits.astype(out_ref.dtype)


def prepare_params(embedding, fc_w, fc_b, *, table_dtype=jnp.bfloat16,
                   tile_v=1024, vocab_splits=1):
    """One-time parameter prep: pad + cast the table/weights outside the forward path."""
    V, E = embedding.shape
    n_out = fc_w.shape[1]
    assert n_out <= N_PAD

    tile_v = max(128, _round_up(min(int(tile_v), _round_up(V, 128)), 128))
    V_pad = _round_up(V, tile_v * vocab_splits)

    emb_p = jnp.pad(embedding.astype(table_dtype), ((0, V_pad - V), (0, 0)))
    w_p = jnp.pad(fc_w.astype(jnp.float32), ((0, 0), (0, N_PAD - n_out)))
    b = fc_b.reshape(1, -1).astype(jnp.float32)

    return dict(emb=emb_p, w=w_p, b=b, n_out=n_out,
                tile_v=tile_v, vocab_splits=int(vocab_splits))


def baseline_forward(ids, params, *, tile_b=256, emb_buffers=2):
    """ids: [B, T] int tokens; params from prepare_params. Returns [B, n_out] f32 logits.

    tile_b: 256 is the sweet spot on v6e/v7x (2x256 MXU); use 128 on v5e.
    """
    ids = ids.astype(jnp.int32)
    B, T = ids.shape
    emb_p, w_p = params["emb"], params["w"]
    V_pad, E = emb_p.shape
    tile_v = params["tile_v"]
    splits = params["vocab_splits"]
    n_out = params["n_out"]

    tile_b = max(8, _round_up(int(tile_b), 8))
    tile_b = min(tile_b, _round_up(B, 8))            # clamp for small batches
    B_pad = _round_up(B, tile_b)
    ids_p = jnp.pad(ids, ((0, B_pad - B), (0, 0)))   # pad rows use token 0 (sliced off)

    n_v = V_pad // (tile_v * splits)                 # vocab tiles per split
    grid = (splits, B_pad // tile_b, n_v)            # (parallel, parallel, reduction)

    # Size the scoped-VMEM limit from the actual tile footprint (headroom for v7x's 64 MiB).
    footprint = (2 * tile_b * T * 4
                 + emb_buffers * tile_v * E * emb_p.dtype.itemsize
                 + 2 * E * N_PAD * 4
                 + 2 * tile_b * N_PAD * 4
                 + tile_b * E * 4)
    vmem_limit = max(32 * 1024 * 1024, int(footprint * 1.25))

    emb_spec_kwargs = {}
    if emb_buffers != 2:
        emb_spec_kwargs["pipeline_mode"] = pl.Buffered(emb_buffers)

    out_padded = pl.pallas_call(
        baseline_kernel,
        out_shape=jax.ShapeDtypeStruct((splits, B_pad, N_PAD), jnp.float32),
        grid_spec=pltpu.PrefetchScalarGridSpec(
            num_scalar_prefetch=0,
            grid=grid,
            in_specs=[
                pl.BlockSpec((tile_b, T), lambda s, b, v: (b, 0)),               # ids
                pl.BlockSpec((tile_v, E), lambda s, b, v: (s * n_v + v, 0),      # emb tile
                             **emb_spec_kwargs),
                pl.BlockSpec((E, N_PAD), lambda s, b, v: (0, 0)),                # fc weight
            ],
            out_specs=pl.BlockSpec((1, tile_b, N_PAD), lambda s, b, v: (s, b, 0)),
            scratch_shapes=[pltpu.VMEM((tile_b, E), jnp.float32)],               # pooled acc
        ),
        compiler_params=pltpu.CompilerParams(
            dimension_semantics=("parallel", "parallel", "arbitrary"),
            vmem_limit_bytes=vmem_limit,
        ),
    )(ids_p, emb_p, w_p)

    # Sum per-split partial logits, add bias, slice off padding.
    logits = out_padded.sum(axis=0)[:B, :n_out] + params["b"]
    return logits


if __name__ == "__main__":
    B, T = 2, 8          # batch, sequence length
    V, E = 32, 32        # vocab size, taille_embedding

    key = jax.random.PRNGKey(0)
    k_emb, k_w, k_b, k_ids = jax.random.split(key, 4)

    # deterministic synthetic parameters (nn.Embedding.from_pretrained + nn.Linear(E, 2))
    embedding = jax.random.normal(k_emb, (V, E), dtype=jnp.float32)
    fc_w = jax.random.normal(k_w, (E, 2), dtype=jnp.float32) * (1.0 / jnp.sqrt(E))
    fc_b = jax.random.normal(k_b, (1, 2), dtype=jnp.float32) * 0.01

    # deterministic token ids
    ids = jax.random.randint(k_ids, (B, T), 0, V, dtype=jnp.int32)

    # reference: embedding lookup -> mean over sequence -> linear
    ref = jnp.mean(embedding[ids], axis=1) @ fc_w + fc_b

    # 1) exact-numerics path: f32 table, single vocab split.
    params_f32 = prepare_params(embedding, fc_w, fc_b, table_dtype=jnp.float32)
    out = jax.block_until_ready(baseline_forward(ids, params_f32))
    assert out.shape == (B, 2)
    assert jnp.allclose(out, ref, atol=1e-5, rtol=1e-5)

    # 2) perf path: bf16-streamed table + vocab reduction split across 2 cores
    #    (the v7x small-batch configuration).
    params_bf16 = prepare_params(embedding, fc_w, fc_b,
                                 table_dtype=jnp.bfloat16, vocab_splits=2)
    out2 = jax.block_until_ready(baseline_forward(ids, params_bf16))
    assert out2.shape == (B, 2)
    assert jnp.allclose(out2, ref, atol=2e-2, rtol=2e-2)

    print("KERNEL_OK")
</pallas_src>

<mosaic_0001>
module attributes {stable_mosaic.version = 11 : i64} {
  func.func @baseline_kernel(%arg0: i32, %arg1: i32, %arg2: i32, %arg3: memref<8x8xi32, #tpu.memory_space<vmem>>, %arg4: memref<128x32xf32, #tpu.memory_space<vmem>>, %arg5: memref<32x128xf32, #tpu.memory_space<vmem>>, %arg6: memref<1x8x128xf32, #tpu.memory_space<vmem>>, %arg7: memref<8x32xf32, #tpu.memory_space<vmem>>) attributes {dimension_semantics = [#tpu.dimension_semantics<parallel>, #tpu.dimension_semantics<parallel>, #tpu.dimension_semantics<arbitrary>], iteration_bounds = array<i64: 1, 1, 1>, scalar_prefetch = 0 : i64, scratch_operands = 1 : i64, tpu.core_type = #tpu.core_type<tc>, window_params = [{transform_indices = @transform_0, window_bounds = array<i64: 8, 8>}, {transform_indices = @transform_1, window_bounds = array<i64: 128, 32>}, {pipeline_mode = #tpu.pipeline_mode<synchronous>, transform_indices = @transform_2, window_bounds = array<i64: 32, 128>}, {transform_indices = @transform_3, window_bounds = array<i64: 1, 8, 128>}]} {
    %c0_i32 = arith.constant 0 : i32
    %0 = arith.cmpi eq, %arg2, %c0_i32 : i32
    %1 = arith.extui %0 : i1 to i32
    %c0_i32_0 = arith.constant 0 : i32
    %2 = arith.cmpi ne, %1, %c0_i32_0 : i32
    scf.if %2 {
      %cst_11 = arith.constant 0.000000e+00 : f32
      %67 = vector.broadcast %cst_11 : f32 to vector<8x32xf32>
      %c0_12 = arith.constant 0 : index
      %c0_13 = arith.constant 0 : index
      %68 = vector.load %arg7[%c0_12, %c0_13] : memref<8x32xf32, #tpu.memory_space<vmem>>, vector<8x32xf32>
      tpu.vector_store %arg7[%c0_12, %c0_13], %67 {strides = array<i32>} : memref<8x32xf32, #tpu.memory_space<vmem>>, vector<8x32xf32>,
    } else {
    }
    %c0 = arith.constant 0 : index
    %c0_1 = arith.constant 0 : index
    %3 = vector.load %arg3[%c0, %c0_1] : memref<8x8xi32, #tpu.memory_space<vmem>>, vector<8x8xi32>
    %c1_i32 = arith.constant 1 : i32
    %4 = arith.muli %arg0, %c1_i32 : i32
    %5 = arith.addi %4, %arg2 : i32
    %c128_i32 = arith.constant 128 : i32
    %6 = arith.muli %5, %c128_i32 : i32
    %7 = tpu.iota {dimensions = array<i32: 1>} : vector<8x128xi32>
    %8 = vector.broadcast %6 : i32 to vector<8x128xi32>
    %9 = arith.addi %7, %8 : vector<8x128xi32>
    %cst = arith.constant 0.000000e+00 : f32
    %10 = vector.broadcast %cst : f32 to vector<8x128xf32>
    %11 = vector.extract_strided_slice %3 {offsets = [0, 0], sizes = [8, 1], strides = [1, 1]} : vector<8x8xi32> to vector<8x1xi32>
    %12 = vector.broadcast %11 : vector<8x1xi32> to vector<8x128xi32>
    %13 = arith.cmpi eq, %12, %9 : vector<8x128xi32>
    %14 = arith.extui %13 : vector<8x128xi1> to vector<8x128xi32>
    %15 = arith.sitofp %14 : vector<8x128xi32> to vector<8x128xf32>
    %16 = arith.addf %10, %15 : vector<8x128xf32>
    %17 = vector.extract_strided_slice %3 {offsets = [0, 1], sizes = [8, 1], strides = [1, 1]} : vector<8x8xi32> to vector<8x1xi32>
    %18 = vector.broadcast %17 : vector<8x1xi32> to vector<8x128xi32>
    %19 = arith.cmpi eq, %18, %9 : vector<8x128xi32>
    %20 = arith.extui %19 : vector<8x128xi1> to vector<8x128xi32>
    %21 = arith.sitofp %20 : vector<8x128xi32> to vector<8x128xf32>
    %22 = arith.addf %16, %21 : vector<8x128xf32>
    %23 = vector.extract_strided_slice %3 {offsets = [0, 2], sizes = [8, 1], strides = [1, 1]} : vector<8x8xi32> to vector<8x1xi32>
    %24 = vector.broadcast %23 : vector<8x1xi32> to vector<8x128xi32>
    %25 = arith.cmpi eq, %24, %9 : vector<8x128xi32>
    %26 = arith.extui %25 : vector<8x128xi1> to vector<8x128xi32>
    %27 = arith.sitofp %26 : vector<8x128xi32> to vector<8x128xf32>
    %28 = arith.addf %22, %27 : vector<8x128xf32>
    %29 = vector.extract_strided_slice %3 {offsets = [0, 3], sizes = [8, 1], strides = [1, 1]} : vector<8x8xi32> to vector<8x1xi32>
    %30 = vector.broadcast %29 : vector<8x1xi32> to vector<8x128xi32>
    %31 = arith.cmpi eq, %30, %9 : vector<8x128xi32>
    %32 = arith.extui %31 : vector<8x128xi1> to vector<8x128xi32>
    %33 = arith.sitofp %32 : vector<8x128xi32> to vector<8x128xf32>
    %34 = arith.addf %28, %33 : vector<8x128xf32>
    %35 = vector.extract_strided_slice %3 {offsets = [0, 4], sizes = [8, 1], strides = [1, 1]} : vector<8x8xi32> to vector<8x1xi32>
    %36 = vector.broadcast %35 : vector<8x1xi32> to vector<8x128xi32>
    %37 = arith.cmpi eq, %36, %9 : vector<8x128xi32>
    %38 = arith.extui %37 : vector<8x128xi1> to vector<8x128xi32>
    %39 = arith.sitofp %38 : vector<8x128xi32> to vector<8x128xf32>
    %40 = arith.addf %34, %39 : vector<8x128xf32>
    %41 = vector.extract_strided_slice %3 {offsets = [0, 5], sizes = [8, 1], strides = [1, 1]} : vector<8x8xi32> to vector<8x1xi32>
    %42 = vector.broadcast %41 : vector<8x1xi32> to vector<8x128xi32>
    %43 = arith.cmpi eq, %42, %9 : vector<8x128xi32>
    %44 = arith.extui %43 : vector<8x128xi1> to vector<8x128xi32>
    %45 = arith.sitofp %44 : vector<8x128xi32> to vector<8x128xf32>
    %46 = arith.addf %40, %45 : vector<8x128xf32>
    %47 = vector.extract_strided_slice %3 {offsets = [0, 6], sizes = [8, 1], strides = [1, 1]} : vector<8x8xi32> to vector<8x1xi32>
    %48 = vector.broadcast %47 : vector<8x1xi32> to vector<8x128xi32>
    %49 = arith.cmpi eq, %48, %9 : vector<8x128xi32>
    %50 = arith.extui %49 : vector<8x128xi1> to vector<8x128xi32>
    %51 = arith.sitofp %50 : vector<8x128xi32> to vector<8x128xf32>
    %52 = arith.addf %46, %51 : vector<8x128xf32>
    %53 = vector.extract_strided_slice %3 {offsets = [0, 7], sizes = [8, 1], strides = [1, 1]} : vector<8x8xi32> to vector<8x1xi32>
    %54 = vector.broadcast %53 : vector<8x1xi32> to vector<8x128xi32>
    %55 = arith.cmpi eq, %54, %9 : vector<8x128xi32>
    %56 = arith.extui %55 : vector<8x128xi1> to vector<8x128xi32>
    %57 = arith.sitofp %56 : vector<8x128xi32> to vector<8x128xf32>
    %58 = arith.addf %52, %57 : vector<8x128xf32>
    %c0_2 = arith.constant 0 : index
    %c0_3 = arith.constant 0 : index
    %59 = vector.load %arg7[%c0_2, %c0_3] : memref<8x32xf32, #tpu.memory_space<vmem>>, vector<8x32xf32>
    %c0_4 = arith.constant 0 : index
    %c0_5 = arith.constant 0 : index
    %60 = vector.load %arg4[%c0_4, %c0_5] : memref<128x32xf32, #tpu.memory_space<vmem>>, vector<128x32xf32>
    %cst_6 = arith.constant dense<0.000000e+00> : vector<8x32xf32>
    %61 = tpu.matmul %58, %60, %cst_6 {dimension_numbers = #tpu.dot_dimension_numbers<[1], [0], [0], [1], [0, 0, 1, 1], [], []>} : vector<8x128xf32>, vector<128x32xf32>, vector<8x32xf32> -> vector<8x32xf32>
    %62 = arith.addf %59, %61 : vector<8x32xf32>
    %c0_7 = arith.constant 0 : index
    %c0_8 = arith.constant 0 : index
    %63 = vector.load %arg7[%c0_7, %c0_8] : memref<8x32xf32, #tpu.memory_space<vmem>>, vector<8x32xf32>
    tpu.vector_store %arg7[%c0_7, %c0_8], %62 {strides = array<i32>} : memref<8x32xf32, #tpu.memory_space<vmem>>, vector<8x32xf32>,
    %c0_i32_9 = arith.constant 0 : i32
    %64 = arith.cmpi eq, %arg2, %c0_i32_9 : i32
    %65 = arith.extui %64 : i1 to i32
    %c0_i32_10 = arith.constant 0 : i32
    %66 = arith.cmpi ne, %65, %c0_i32_10 : i32
    scf.if %66 {
      %c0_11 = arith.constant 0 : index
      %c0_12 = arith.constant 0 : index
      %67 = vector.load %arg7[%c0_11, %c0_12] : memref<8x32xf32, #tpu.memory_space<vmem>>, vector<8x32xf32>
      %cst_13 = arith.constant 1.250000e-01 : f32
      %68 = vector.broadcast %cst_13 : f32 to vector<8x32xf32>
      %69 = arith.mulf %67, %68 : vector<8x32xf32>
      %c0_14 = arith.constant 0 : index
      %c0_15 = arith.constant 0 : index
      %70 = vector.load %arg5[%c0_14, %c0_15] : memref<32x128xf32, #tpu.memory_space<vmem>>, vector<32x128xf32>
      %cst_16 = arith.constant dense<0.000000e+00> : vector<8x128xf32>
      %71 = tpu.matmul %69, %70, %cst_16 {dimension_numbers = #tpu.dot_dimension_numbers<[1], [0], [0], [1], [0, 0, 1, 1], [], []>} : vector<8x32xf32>, vector<32x128xf32>, vector<8x128xf32> -> vector<8x128xf32>
      %c0_17 = arith.constant 0 : index
      %c0_18 = arith.constant 0 : index
      %c0_19 = arith.constant 0 : index
      %72 = vector.load %arg6[%c0_17, %c0_18, %c0_19] : memref<1x8x128xf32, #tpu.memory_space<vmem>>, vector<1x8x128xf32>
      %73 = vector.shape_cast %72 : vector<1x8x128xf32> to vector<8x128xf32>
      %74 = vector.shape_cast %71 : vector<8x128xf32> to vector<1x8x128xf32>
      tpu.vector_store %arg6[%c0_17, %c0_18, %c0_19], %74 {strides = array<i32>} : memref<1x8x128xf32, #tpu.memory_space<vmem>>, vector<1x8x128xf32>,
    } else {
    }
    return
  }
  func.func @transform_0(%arg0: i32, %arg1: i32, %arg2: i32) -> (i32, i32) {
    %c0_i32 = arith.constant 0 : i32
    %c0_i32_0 = arith.constant 0 : i32
    return %arg1, %c0_i32 : i32, i32
  }
  func.func @transform_1(%arg0: i32, %arg1: i32, %arg2: i32) -> (i32, i32) {
    %c1_i32 = arith.constant 1 : i32
    %0 = arith.muli %arg0, %c1_i32 : i32
    %1 = arith.addi %0, %arg2 : i32
    %c0_i32 = arith.constant 0 : i32
    %c0_i32_0 = arith.constant 0 : i32
    return %1, %c0_i32 : i32, i32
  }
  func.func @transform_2(%arg0: i32, %arg1: i32, %arg2: i32) -> (i32, i32) {
    %c0_i32 = arith.constant 0 : i32
    %c0_i32_0 = arith.constant 0 : i32
    %c0_i32_1 = arith.constant 0 : i32
    return %c0_i32, %c0_i32_0 : i32, i32
  }
  func.func @transform_3(%arg0: i32, %arg1: i32, %arg2: i32) -> (i32, i32, i32) {
    %c0_i32 = arith.constant 0 : i32
    %c0_i32_0 = arith.constant 0 : i32
    return %arg0, %arg1, %c0_i32 : i32, i32, i32
  }
}

</mosaic_0001>

<llo_original>
// kernel: tpu_custom_call.1
$region0: #{tpu_custom_call.1}
  #allocation0 [shape = 'u32[]', space=smem, size = 0x4, offset = 0x4, fixed_abs, tag = 'smem constant byte address 0x4 - core index']
  #allocation1 [shape = 'u32[144,128]{1,0:T(1,128)}', space=vmem, size = 0x12000, scoped, tag = 'internal scratch']
  #allocation2 [shape = 'f32[8,32]{1,0:T(8,128)}', space=vmem, size = 0x1000, scoped, tag = 'scratch operand']
  %s0 = inlined_call_operand.vmem [shape: s32[8,8], index: 0, kind: input, shape index: {}]
  %s1 = inlined_call_operand.vmem [shape: f32[128,32], index: 1, kind: input, shape index: {}]
  %s2 = inlined_call_operand.vmem [shape: f32[32,128], index: 2, kind: input, shape index: {}]
  %s3 = inlined_call_operand.hbm [shape: f32[1,8,128], index: 3, kind: output, shape index: {}]
  %s4 = sld [smem:[#allocation0]]
  $region30: #{tpu_custom_call.1} parent=0
    _
  %s6 = ssub.s32 1, %s4
  %s7 = scalar_select 0, %s6, %s4
  $region1: #{tpu_custom_call.1} parent=0
    #allocation3 [shape = 'u8[4096]{0}', space=vmem, size = 0x1000, scoped, tag = 'output window, operand 0, single buffered']
    #allocation4 [shape = 's32[1]{0}', space=sflag, size = 0x4, scoped, tag = 'scoped memory for tpu_custom_call.1']
    %8 = vsyncpa [#allocation4], 0
    // Predicated region
    $region2: #{tpu_custom_call.1} parent=1 // pred_check
      _
    $region3: #{tpu_custom_call.1} parent=1 // pred_check_branch
      %10 = sbr.rel (0) target = $region5
    $region4: #{tpu_custom_call.1} parent=1 // pred_region
      _
    $region5: #{tpu_custom_call.1} parent=1 // pred_fallthru
      _
    // Predicated region
    $region6: #{tpu_custom_call.1} parent=1 // pred_check
      _
    $region7: #{tpu_custom_call.1} parent=1 // pred_check_branch
      %12 = sbr.rel (0) target = $region9
    $region8: #{tpu_custom_call.1} parent=1 // pred_region
      %s13 = sadd.s32 0, 0
      %s14 = smul.u32 16, %s13
      %p15 = scmp.lt.s32.totalorder %s14, 15
      %s16 = scalar_select %p15, %s14, 15
      %s17 = smul.addr %s16, 8
      %s18 = scalar_lea.vmem %s1, %s17
      %s19 = sadd.s32 0, 0
      %s20 = smul.u32 16, %s19
    $region9: #{tpu_custom_call.1} parent=1 // pred_fallthru
      _
    // Predicated region
    $region10: #{tpu_custom_call.1} parent=1 // pred_check
      _
    $region11: #{tpu_custom_call.1} parent=1 // pred_check_branch
      %22 = sbr.rel (0) target = $region13
    $region12: #{tpu_custom_call.1} parent=1 // pred_region
      _
    $region13: #{tpu_custom_call.1} parent=1 // pred_fallthru
      _
    %s23 = sadd.s32 0, 0
    %s24 = smul.u32 16, %s23
    %p25 = scmp.lt.s32.totalorder %s24, 15
    %s26 = scalar_select %p25, %s24, 15
    %s27 = smul.addr %s26, 8
    %s28 = scalar_lea.vmem %s1, %s27
    %s29 = sadd.s32 0, 0
    %s30 = smul.u32 16, %s29
    %p31 = scmp.lt.s32.totalorder %s30, 15
    %s32 = scalar_select %p31, %s30, 15
    %s33 = smul.addr %s32, 8
    %s34 = scalar_lea.vmem %s1, %s33
    %s35 = sadd.s32 0, 0
    %s36 = smul.u32 16, %s35
    %p37 = scmp.eq.s32.totalorder 0, 0
    // Predicated region
    $region14: #{tpu_custom_call.1} parent=1 // pred_check
      %p38 = pneg %p37
    $region15: #{tpu_custom_call.1} parent=1 // pred_check_branch
      %40 = sbr.rel (%p38) target = $region17
    $region16: #{tpu_custom_call.1} parent=1 // pred_region
      %vm41 = vcmask 261120
      %42 = vst.msk [vmem:[#allocation2] sm:$0xff] %vm41, 0.0
    $region17: #{tpu_custom_call.1} parent=1 // pred_fallthru
      _
    %v43 = vld [vmem:[%s0] sm:$0xff]
    %s44 = sadd.s32 0, 0
    %s45 = smul.u32 %s44, 128
    %v46 = vlaneseq
    %v47 = vand.u32 %v46, 127
    %v48 = vstv %s45
    %v49 = vadd.s32 %v47, %v48
    %50 = vset.pattern.permute.xlu0 0
    %51 = vperm.xlu0 %50, %v43
    %v52 = vpop.permute.xlu0 %51
    %vm53 = vcmp.eq.s32.totalorder %v52, %v49
    %v54 = vsel %vm53, 1, 0
    %v55 = vcvt.s32.f32 %v54
    %v56 = vadd.f32 %v55, 0.0
    %57 = vset.pattern.permute.xlu0 1
    %58 = vperm.xlu0 %57, %v43
    %v59 = vpop.permute.xlu0 %58
    %vm60 = vcmp.eq.s32.totalorder %v59, %v49
    %v61 = vsel %vm60, 1, 0
    %v62 = vcvt.s32.f32 %v61
    %v63 = vadd.f32 %v56, %v62
    %64 = vset.pattern.permute.xlu0 2
    %65 = vperm.xlu0 %64, %v43
    %v66 = vpop.permute.xlu0 %65
    %vm67 = vcmp.eq.s32.totalorder %v66, %v49
    %v68 = vsel %vm67, 1, 0
    %v69 = vcvt.s32.f32 %v68
    %v70 = vadd.f32 %v63, %v69
    %71 = vset.pattern.permute.xlu0 3
    %72 = vperm.xlu0 %71, %v43
    %v73 = vpop.permute.xlu0 %72
    %vm74 = vcmp.eq.s32.totalorder %v73, %v49
    %v75 = vsel %vm74, 1, 0
    %v76 = vcvt.s32.f32 %v75
    %v77 = vadd.f32 %v70, %v76
    %78 = vset.pattern.permute.xlu0 4
    %79 = vperm.xlu0 %78, %v43
    %v80 = vpop.permute.xlu0 %79
    %vm81 = vcmp.eq.s32.totalorder %v80, %v49
    %v82 = vsel %vm81, 1, 0
    %v83 = vcvt.s32.f32 %v82
    %v84 = vadd.f32 %v77, %v83
    %85 = vset.pattern.permute.xlu0 5
    %86 = vperm.xlu0 %85, %v43
    %v87 = vpop.permute.xlu0 %86
    %vm88 = vcmp.eq.s32.totalorder %v87, %v49
    %v89 = vsel %vm88, 1, 0
    %v90 = vcvt.s32.f32 %v89
    %v91 = vadd.f32 %v84, %v90
    %92 = vset.pattern.permute.xlu0 6
    %93 = vperm.xlu0 %92, %v43
    %v94 = vpop.permute.xlu0 %93
    %vm95 = vcmp.eq.s32.totalorder %v94, %v49
    %v96 = vsel %vm95, 1, 0
    %v97 = vcvt.s32.f32 %v96
    %v98 = vadd.f32 %v91, %v97
    %99 = vset.pattern.permute.xlu0 7
    %100 = vperm.xlu0 %99, %v43
    %v101 = vpop.permute.xlu0 %100
    %vm102 = vcmp.eq.s32.totalorder %v101, %v49
    %v103 = vsel %vm102, 1, 0
    %v104 = vcvt.s32.f32 %v103
    %v105 = vadd.f32 %v98, %v104
    %v106 = vld [vmem:[#allocation2] sm:$0xff]
    %v107 = vld [vmem:[%s34] sm:$0xff]
    %v108 = vld [vmem:[%s34 + $0x8] sm:$0xff]
    %v109 = vld [vmem:[%s34 + $0x10] sm:$0xff]
    %v110 = vld [vmem:[%s34 + $0x18] sm:$0xff]
    %v111 = vld [vmem:[%s34 + $0x20] sm:$0xff]
    %v112 = vld [vmem:[%s34 + $0x28] sm:$0xff]
    %v113 = vld [vmem:[%s34 + $0x30] sm:$0xff]
    %v114 = vld [vmem:[%s34 + $0x38] sm:$0xff]
    %v115 = vld [vmem:[%s34 + $0x40] sm:$0xff]
    %v116 = vld [vmem:[%s34 + $0x48] sm:$0xff]
    %v117 = vld [vmem:[%s34 + $0x50] sm:$0xff]
    %v118 = vld [vmem:[%s34 + $0x58] sm:$0xff]
    %v119 = vld [vmem:[%s34 + $0x60] sm:$0xff]
    %v120 = vld [vmem:[%s34 + $0x68] sm:$0xff]
    %v121 = vld [vmem:[%s34 + $0x70] sm:$0xff]
    %v122 = vld [vmem:[%s34 + $0x78] sm:$0xff]
    %123 = vmatprep.subr.mxu0 0.0
    %124 = vmatpush1.msra.mxu0 %v107
    %125 = vmatprep.subr.mxu0 0.0
    %126 = vmatpush1.msra.mxu0 %v108
    %127 = vmatprep.subr.mxu0 0.0
    %128 = vmatpush1.msra.mxu0 %v109
    %129 = vmatprep.subr.mxu0 0.0
    %130 = vmatpush1.msra.mxu0 %v110
    %131 = vmatprep.subr.mxu0 0.0
    %132 = vmatpush1.msra.mxu0 %v111
    %133 = vmatprep.subr.mxu0 0.0
    %134 = vmatpush1.msra.mxu0 %v112
    %135 = vmatprep.subr.mxu0 0.0
    %136 = vmatpush1.msra.mxu0 %v113
    %137 = vmatprep.subr.mxu0 0.0
    %138 = vmatpush1.msra.mxu0 %v114
    %139 = vmatprep.subr.mxu0 0.0
    %140 = vmatpush1.msra.mxu0 %v115
    %141 = vmatprep.subr.mxu0 0.0
    %142 = vmatpush1.msra.mxu0 %v116
    %143 = vmatprep.subr.mxu0 0.0
    %144 = vmatpush1.msra.mxu0 %v117
    %145 = vmatprep.subr.mxu0 0.0
    %146 = vmatpush1.msra.mxu0 %v118
    %147 = vmatprep.subr.mxu0 0.0
    %148 = vmatpush1.msra.mxu0 %v119
    %149 = vmatprep.subr.mxu0 0.0
    %150 = vmatpush1.msra.mxu0 %v120
    %151 = vmatprep.subr.mxu0 0.0
    %152 = vmatpush1.msra.mxu0 %v121
    %153 = vmatprep.subr.mxu0 0.0
    %154 = vmatpush1.msra.mxu0 %v122
    %155 = vmatprep.subr.mxu0 0.0
    %156 = vmatpush1.msra.mxu0 0.0
    %157 = vmatprep.subr.mxu0 0.0
    %158 = vmatpush1.msra.mxu0 0.0
    %159 = vmatprep.subr.mxu0 0.0
    %160 = vmatpush1.msra.mxu0 0.0
    %161 = vmatprep.subr.mxu0 0.0
    %162 = vmatpush1.msra.mxu0 0.0
    %163 = vmatprep.subr.mxu0 0.0
    %164 = vmatpush1.msra.mxu0 0.0
    %165 = vmatprep.subr.mxu0 0.0
    %166 = vmatpush1.msra.mxu0 0.0
    %167 = vmatprep.subr.mxu0 0.0
    %168 = vmatpush1.msra.mxu0 0.0
    %169 = vmatprep.subr.mxu0 0.0
    %170 = vmatpush1.msra.mxu0 0.0
    %171 = vmatprep.subr.mxu0 0.0
    %172 = vmatpush1.msra.mxu0 0.0
    %173 = vmatprep.subr.mxu0 0.0
    %174 = vmatpush1.msra.mxu0 0.0
    %175 = vmatprep.subr.mxu0 0.0
    %176 = vmatpush1.msra.mxu0 0.0
    %177 = vmatprep.subr.mxu0 0.0
    %178 = vmatpush1.msra.mxu0 0.0
    %179 = vmatprep.subr.mxu0 0.0
    %180 = vmatpush1.msra.mxu0 0.0
    %181 = vmatprep.subr.mxu0 0.0
    %182 = vmatpush1.msra.mxu0 0.0
    %183 = vmatprep.subr.mxu0 0.0
    %184 = vmatpush1.msra.mxu0 0.0
    %185 = vmatprep.subr.mxu0 0.0
    %186 = vmatpush1.msra.mxu0 0.0
    %187 = vmatprep.mubr.f32.mxu0 0.0
    %188 = vmatmul.mubr.f32.gmra.mrb[0].mxu0 %v105
    %v189 = vpop.f32.mrb[0].mxu0
    %v190 = vadd.f32 0.0, %v189
    %v191 = vpop.f32.mrb[0].mxu0
    %192 = vdwg.mxu0
    %v193 = vadd.f32 %v106, %v190
    %vm194 = vcmask 261120
    %195 = vst.msk [vmem:[#allocation2] sm:$0xff] %vm194, %v193
    // Predicated region
    $region18: #{tpu_custom_call.1} parent=1 // pred_check
      %p196 = pneg %p37
    $region19: #{tpu_custom_call.1} parent=1 // pred_check_branch
      %198 = sbr.rel (%p196) target = $region21
    $region20: #{tpu_custom_call.1} parent=1 // pred_region
      %v199 = vld [vmem:[#allocation2] sm:$0xff]
      %v200 = vmul.f32 %v199, 0.125
      %v201 = vld [vmem:[%s2] sm:$0xff]
      %v202 = vld [vmem:[%s2 + $0x8] sm:$0xff]
      %v203 = vld [vmem:[%s2 + $0x10] sm:$0xff]
      %v204 = vld [vmem:[%s2 + $0x18] sm:$0xff]
      %v206 = vsel %vm194, %v200, 0
      %208 = vmatprep.subr.mxu0 0.0
      %209 = vmatpush1.msra.mxu0 %v201
      %210 = vmatprep.subr.mxu0 0.0
      %211 = vmatpush1.msra.mxu0 %v202
      %212 = vmatprep.subr.mxu0 0.0
      %213 = vmatpush1.msra.mxu0 %v203
      %214 = vmatprep.subr.mxu0 0.0
      %215 = vmatpush1.msra.mxu0 %v204
      %216 = vmatprep.subr.mxu0 0.0
      %217 = vmatpush1.msra.mxu0 0.0
      %218 = vmatprep.subr.mxu0 0.0
      %219 = vmatpush1.msra.mxu0 0.0
      %220 = vmatprep.subr.mxu0 0.0
      %221 = vmatpush1.msra.mxu0 0.0
      %222 = vmatprep.subr.mxu0 0.0
      %223 = vmatpush1.msra.mxu0 0.0
      %224 = vmatprep.subr.mxu0 0.0
      %225 = vmatpush1.msra.mxu0 0.0
      %226 = vmatprep.subr.mxu0 0.0
      %227 = vmatpush1.msra.mxu0 0.0
      %228 = vmatprep.subr.mxu0 0.0
      %229 = vmatpush1.msra.mxu0 0.0
      %230 = vmatprep.subr.mxu0 0.0
      %231 = vmatpush1.msra.mxu0 0.0
      %232 = vmatprep.subr.mxu0 0.0
      %233 = vmatpush1.msra.mxu0 0.0
      %234 = vmatprep.subr.mxu0 0.0
      %235 = vmatpush1.msra.mxu0 0.0
      %236 = vmatprep.subr.mxu0 0.0
      %237 = vmatpush1.msra.mxu0 0.0
      %238 = vmatprep.subr.mxu0 0.0
      %239 = vmatpush1.msra.mxu0 0.0
      %240 = vmatprep.subr.mxu0 0.0
      %241 = vmatpush1.msra.mxu0 0.0
      %242 = vmatprep.subr.mxu0 0.0
      %243 = vmatpush1.msra.mxu0 0.0
      %244 = vmatprep.subr.mxu0 0.0
      %245 = vmatpush1.msra.mxu0 0.0
      %246 = vmatprep.subr.mxu0 0.0
      %247 = vmatpush1.msra.mxu0 0.0
      %248 = vmatprep.subr.mxu0 0.0
      %249 = vmatpush1.msra.mxu0 0.0
      %250 = vmatprep.subr.mxu0 0.0
      %251 = vmatpush1.msra.mxu0 0.0
      %252 = vmatprep.subr.mxu0 0.0
      %253 = vmatpush1.msra.mxu0 0.0
      %254 = vmatprep.subr.mxu0 0.0
      %255 = vmatpush1.msra.mxu0 0.0
      %256 = vmatprep.subr.mxu0 0.0
      %257 = vmatpush1.msra.mxu0 0.0
      %258 = vmatprep.subr.mxu0 0.0
      %259 = vmatpush1.msra.mxu0 0.0
      %260 = vmatprep.subr.mxu0 0.0
      %261 = vmatpush1.msra.mxu0 0.0
      %262 = vmatprep.subr.mxu0 0.0
      %263 = vmatpush1.msra.mxu0 0.0
      %264 = vmatprep.subr.mxu0 0.0
      %265 = vmatpush1.msra.mxu0 0.0
      %266 = vmatprep.subr.mxu0 0.0
      %267 = vmatpush1.msra.mxu0 0.0
      %268 = vmatprep.subr.mxu0 0.0
      %269 = vmatpush1.msra.mxu0 0.0
      %270 = vmatprep.subr.mxu0 0.0
      %271 = vmatpush1.msra.mxu0 0.0
      %272 = vmatprep.mubr.f32.mxu0 0.0
      %273 = vmatmul.mubr.f32.gmra.mrb[0].mxu0 %v206
      %v274 = vpop.f32.mrb[0].mxu0
      %v275 = vadd.f32 0.0, %v274
      %v276 = vpop.f32.mrb[0].mxu0
      %277 = vdwg.mxu0
      %278 = vst [vmem:[#allocation3] sm:$0xff] %v275
    $region21: #{tpu_custom_call.1} parent=1 // pred_fallthru
      _
    // Predicated region
    $region22: #{tpu_custom_call.1} parent=1 // pred_check
      _
    $region23: #{tpu_custom_call.1} parent=1 // pred_check_branch
      %280 = sbr.rel (0) target = $region25
    $region24: #{tpu_custom_call.1} parent=1 // pred_region
      %s282 = ssub.s32 128, 128
      %283 = vsyncadd [#allocation4], %s282
      %s285 = sshll.u32 [#allocation3], 4
      %s286 = int_to_ptr.vmem [resolvable:$true] %s285
      %288 = dma.vmem_to_hbm [thread:$0]  %s286, 128, %s3, [#allocation4]
    $region25: #{tpu_custom_call.1} parent=1 // pred_fallthru
      _
    // Predicated region
    $region26: #{tpu_custom_call.1} parent=1 // pred_check
      _
    $region27: #{tpu_custom_call.1} parent=1 // pred_check_branch
      %290 = sbr.rel (0) target = $region29
    $region28: #{tpu_custom_call.1} parent=1 // pred_region
      %291 = dma.done [#allocation4], 128
    $region29: #{tpu_custom_call.1} parent=1 // pred_fallthru
      _
    %292 = vsyncpa [#allocation4], 1

</llo_original>
